<compile_context>
chip_gen: v7x
topology: tpu7x:2x2x1
jax: 0.10.0
libtpu: 0.0.40
codegen_flags: <defaults>
</compile_context>

<pallas_src>
import jax
import jax.numpy as jnp
from jax import lax
from jax.experimental import pallas as pl
from jax.experimental.pallas import tpu as pltpu


def _cnn_ori_kernel(x_ref, m1_ref, b1_ref, m2_ref, b2_ref, o_ref):
    # x_ref : (NB, C*L)       batch block, rows = samples, lanes = flat features
    # m1_ref: (C*L, P1*L2)    folded BN1 + conv1(s=2) + avgpool(3,2)
    # b1_ref: (1, P1*L2)      folded bias (constant over pooled positions)
    # m2_ref: (P1*L2, P2*L3)  folded BN2 + conv2(s=2)
    # b2_ref: (1, P2*L3)
    # o_ref : (NB, P2*L3)     flattened output rows (== PyTorch Flatten(1,-1))
    x = x_ref[...]
    h = jnp.dot(x, m1_ref[...], preferred_element_type=jnp.float32) + b1_ref[...]
    h = jnp.maximum(h, 0.0)                                   # ReLU after pool
    y = jnp.dot(h, m2_ref[...], preferred_element_type=jnp.float32) + b2_ref[...]
    o_ref[...] = jnp.maximum(y, 0.0).astype(o_ref.dtype)      # final ReLU


def cnn_ori_forward(x, params):
    """x: (N, C, L) float32. Returns (N, P2*L3) float32 (== Flatten(1,-1))."""
    N, C, L = x.shape
    (g1, be1, m1, v1, w1, b1, g2, be2, m2, v2, w2, b2) = params
    P1 = w1.shape[0]
    P2 = w2.shape[0]
    eps = 1e-5
    f32 = jnp.float32

    L1 = (L - 3) // 2 + 1      # after conv1 (k=3, stride=2, valid)
    L2 = (L1 - 3) // 2 + 1     # after avgpool (k=3, stride=2)
    L3 = (L2 - 3) // 2 + 1     # after conv2 (k=3, stride=2, valid)

    # ---- fold eval-mode BatchNorm into the conv weights / biases ----
    s1 = g1 / jnp.sqrt(v1 + eps)
    t1 = be1 - m1 * s1
    s2 = g2 / jnp.sqrt(v2 + eps)
    t2 = be2 - m2 * s2
    w1f = (w1 * s1[None, :, None]).astype(f32)               # (P1, C, 3)
    w2f = (w2 * s2[None, :, None]).astype(f32)               # (P2, P1, 3)
    beta1 = b1 + jnp.einsum('pck,c->p', w1, t1)              # (P1,)
    beta2 = b2 + jnp.einsum('pck,c->p', w2, t2)              # (P2,)

    # ---- fold conv1(s=2) + avgpool(3,2) into M1 (C*L, P1*L2) ----
    # pool[n,p,m] = beta1[p] + (1/3) * sum_{d,k,c} w1f[p,c,k] * x[n,c,4m+2d+k]
    i_idx = jnp.arange(L)[:, None, None, None]
    m_idx = jnp.arange(L2)[None, :, None, None]
    d_idx = jnp.arange(3)[None, None, :, None]
    k_idx = jnp.arange(3)[None, None, None, :]
    delta1 = (i_idx == 4 * m_idx + 2 * d_idx + k_idx).astype(f32)   # (L,L2,3,3)
    M1 = (jnp.einsum('pck,imdk->cipm', w1f, delta1)
          .reshape(C * L, P1 * L2) / 3.0)
    B1 = jnp.repeat(beta1, L2).reshape(1, P1 * L2).astype(f32)

    # ---- fold conv2(s=2) into M2 (P1*L2, P2*L3) ----
    # y2[n,p,l] = beta2[p] + sum_{k,c} w2f[p,c,k] * h[n,c,2l+k]
    j_idx = jnp.arange(L2)[:, None, None]
    l_idx = jnp.arange(L3)[None, :, None]
    k2_idx = jnp.arange(3)[None, None, :]
    delta2 = (j_idx == 2 * l_idx + k2_idx).astype(f32)               # (L2,L3,3)
    M2 = jnp.einsum('pck,jlk->cjpl', w2f, delta2).reshape(P1 * L2, P2 * L3)
    B2 = jnp.repeat(beta2, L3).reshape(1, P2 * L3).astype(f32)

    # ---- batch-block grid (whole batch per step when N <= 8) ----
    x_flat = x.reshape(N, C * L).astype(f32)        # row-major: col = c*L + i
    NB = N if N <= 8 else 8
    n_blocks = -(-N // NB)
    Npad = n_blocks * NB
    if Npad != N:
        x_flat = jnp.pad(x_flat, ((0, Npad - N), (0, 0)))

    out = pl.pallas_call(
        _cnn_ori_kernel,
        out_shape=jax.ShapeDtypeStruct((Npad, P2 * L3), f32),
        grid=(n_blocks,),
        in_specs=[
            pl.BlockSpec((NB, C * L), lambda i: (i, 0)),
            pl.BlockSpec((C * L, P1 * L2), lambda i: (0, 0)),
            pl.BlockSpec((1, P1 * L2), lambda i: (0, 0)),
            pl.BlockSpec((P1 * L2, P2 * L3), lambda i: (0, 0)),
            pl.BlockSpec((1, P2 * L3), lambda i: (0, 0)),
        ],
        out_specs=pl.BlockSpec((NB, P2 * L3), lambda i: (i, 0)),
        compiler_params=pltpu.CompilerParams(
            dimension_semantics=("parallel",)),
    )(x_flat, M1, B1, M2, B2)

    return out[:N] if Npad != N else out


def _reference_forward(x, params):
    """Pure-JAX reference of CNNOri.forward (eval-mode BN)."""
    (g1, be1, m1, v1, w1, b1, g2, be2, m2, v2, w2, b2) = params
    eps = 1e-5
    dn = ('NCH', 'OIH', 'NCH')
    xb = (x - m1[None, :, None]) / jnp.sqrt(v1 + eps)[None, :, None]
    xb = xb * g1[None, :, None] + be1[None, :, None]
    z = lax.conv_general_dilated(xb, w1, (2,), 'VALID', dimension_numbers=dn)
    z = z + b1[None, :, None]
    p = lax.reduce_window(z, 0.0, lax.add, (1, 1, 3), (1, 1, 2), 'VALID') / 3.0
    r = jnp.maximum(p, 0.0)
    rb = (r - m2[None, :, None]) / jnp.sqrt(v2 + eps)[None, :, None]
    rb = rb * g2[None, :, None] + be2[None, :, None]
    z2 = lax.conv_general_dilated(rb, w2, (2,), 'VALID', dimension_numbers=dn)
    z2 = z2 + b2[None, :, None]
    y = jnp.maximum(z2, 0.0)
    return y.reshape(y.shape[0], -1)


if __name__ == "__main__":
    # Small shapes consistent with the module.
    batch, feature_d, max_tree_len, fst_p = 2, 4, 32, 8
    out_dim = (max_tree_len // fst_p - 1) * fst_p * 2   # 48

    key = jax.random.PRNGKey(0)
    ks = jax.random.split(key, 13)
    x = jax.random.normal(ks[0], (batch, feature_d, max_tree_len), jnp.float32)

    # Deterministic synthetic parameters (shapes from the module __init__).
    g1 = 1.0 + 0.1 * jax.random.normal(ks[1], (feature_d,), jnp.float32)
    be1 = 0.1 * jax.random.normal(ks[2], (feature_d,), jnp.float32)
    m1 = 0.1 * jax.random.normal(ks[3], (feature_d,), jnp.float32)
    v1 = 1.0 + 0.1 * jax.random.uniform(ks[4], (feature_d,), jnp.float32)
    w1 = 0.2 * jax.random.normal(ks[5], (fst_p, feature_d, 3), jnp.float32)
    b1 = 0.1 * jax.random.normal(ks[6], (fst_p,), jnp.float32)
    g2 = 1.0 + 0.1 * jax.random.normal(ks[7], (fst_p,), jnp.float32)
    be2 = 0.1 * jax.random.normal(ks[8], (fst_p,), jnp.float32)
    m2 = 0.1 * jax.random.normal(ks[9], (fst_p,), jnp.float32)
    v2 = 1.0 + 0.1 * jax.random.uniform(ks[10], (fst_p,), jnp.float32)
    w2 = 0.2 * jax.random.normal(ks[11], (fst_p * 2, fst_p, 3), jnp.float32)
    b2 = 0.1 * jax.random.normal(ks[12], (fst_p * 2,), jnp.float32)

    params = (g1, be1, m1, v1, w1, b1, g2, be2, m2, v2, w2, b2)

    y = cnn_ori_forward(x, params)
    y = jax.block_until_ready(y)
    assert y.shape == (batch, out_dim), y.shape

    y_ref = _reference_forward(x, params)
    assert jnp.allclose(y, y_ref, atol=1e-4, rtol=1e-4), \
        float(jnp.max(jnp.abs(y - y_ref)))

    print("KERNEL_OK")
</pallas_src>

<mosaic_0001>
module attributes {stable_mosaic.version = 11 : i64} {
  func.func @_cnn_ori_kernel(%arg0: i32, %arg1: memref<2x128xf32, #tpu.memory_space<vmem>>, %arg2: memref<128x56xf32, #tpu.memory_space<vmem>>, %arg3: memref<1x56xf32, #tpu.memory_space<vmem>>, %arg4: memref<56x48xf32, #tpu.memory_space<vmem>>, %arg5: memref<1x48xf32, #tpu.memory_space<vmem>>, %arg6: memref<2x48xf32, #tpu.memory_space<vmem>>) attributes {dimension_semantics = [#tpu.dimension_semantics<parallel>], iteration_bounds = array<i64: 1>, scalar_prefetch = 0 : i64, scratch_operands = 0 : i64, tpu.core_type = #tpu.core_type<tc>, window_params = [{transform_indices = @transform_0, window_bounds = array<i64: 2, 128>}, {pipeline_mode = #tpu.pipeline_mode<synchronous>, transform_indices = @transform_1, window_bounds = array<i64: 128, 56>}, {pipeline_mode = #tpu.pipeline_mode<synchronous>, transform_indices = @transform_2, window_bounds = array<i64: 1, 56>}, {pipeline_mode = #tpu.pipeline_mode<synchronous>, transform_indices = @transform_3, window_bounds = array<i64: 56, 48>}, {pipeline_mode = #tpu.pipeline_mode<synchronous>, transform_indices = @transform_4, window_bounds = array<i64: 1, 48>}, {transform_indices = @transform_5, window_bounds = array<i64: 2, 48>}]} {
    %c0 = arith.constant 0 : index
    %c0_0 = arith.constant 0 : index
    %0 = vector.load %arg1[%c0, %c0_0] : memref<2x128xf32, #tpu.memory_space<vmem>>, vector<2x128xf32>
    %c0_1 = arith.constant 0 : index
    %c0_2 = arith.constant 0 : index
    %1 = vector.load %arg2[%c0_1, %c0_2] : memref<128x56xf32, #tpu.memory_space<vmem>>, vector<128x56xf32>
    %cst = arith.constant dense<0.000000e+00> : vector<2x56xf32>
    %2 = tpu.matmul %0, %1, %cst {dimension_numbers = #tpu.dot_dimension_numbers<[1], [0], [0], [1], [0, 0, 1, 1], [], []>} : vector<2x128xf32>, vector<128x56xf32>, vector<2x56xf32> -> vector<2x56xf32>
    %c0_3 = arith.constant 0 : index
    %c0_4 = arith.constant 0 : index
    %3 = vector.load %arg3[%c0_3, %c0_4] : memref<1x56xf32, #tpu.memory_space<vmem>>, vector<1x56xf32>
    %4 = vector.broadcast %3 : vector<1x56xf32> to vector<2x56xf32>
    %5 = arith.addf %2, %4 : vector<2x56xf32>
    %cst_5 = arith.constant 0.000000e+00 : f32
    %6 = vector.broadcast %cst_5 : f32 to vector<2x56xf32>
    %7 = arith.maximumf %5, %6 : vector<2x56xf32>
    %c0_6 = arith.constant 0 : index
    %c0_7 = arith.constant 0 : index
    %8 = vector.load %arg4[%c0_6, %c0_7] : memref<56x48xf32, #tpu.memory_space<vmem>>, vector<56x48xf32>
    %cst_8 = arith.constant dense<0.000000e+00> : vector<2x48xf32>
    %9 = tpu.matmul %7, %8, %cst_8 {dimension_numbers = #tpu.dot_dimension_numbers<[1], [0], [0], [1], [0, 0, 1, 1], [], []>} : vector<2x56xf32>, vector<56x48xf32>, vector<2x48xf32> -> vector<2x48xf32>
    %c0_9 = arith.constant 0 : index
    %c0_10 = arith.constant 0 : index
    %10 = vector.load %arg5[%c0_9, %c0_10] : memref<1x48xf32, #tpu.memory_space<vmem>>, vector<1x48xf32>
    %11 = vector.broadcast %10 : vector<1x48xf32> to vector<2x48xf32>
    %12 = arith.addf %9, %11 : vector<2x48xf32>
    %cst_11 = arith.constant 0.000000e+00 : f32
    %13 = vector.broadcast %cst_11 : f32 to vector<2x48xf32>
    %14 = arith.maximumf %12, %13 : vector<2x48xf32>
    %c0_12 = arith.constant 0 : index
    %c0_13 = arith.constant 0 : index
    %15 = vector.load %arg6[%c0_12, %c0_13] : memref<2x48xf32, #tpu.memory_space<vmem>>, vector<2x48xf32>
    tpu.vector_store %arg6[%c0_12, %c0_13], %14 {strides = array<i32>} : memref<2x48xf32, #tpu.memory_space<vmem>>, vector<2x48xf32>,
    return
  }
  func.func @transform_0(%arg0: i32) -> (i32, i32) {
    %c0_i32 = arith.constant 0 : i32
    %c0_i32_0 = arith.constant 0 : i32
    return %arg0, %c0_i32 : i32, i32
  }
  func.func @transform_1(%arg0: i32) -> (i32, i32) {
    %c0_i32 = arith.constant 0 : i32
    %c0_i32_0 = arith.constant 0 : i32
    %c0_i32_1 = arith.constant 0 : i32
    return %c0_i32, %c0_i32_0 : i32, i32
  }
  func.func @transform_2(%arg0: i32) -> (i32, i32) {
    %c0_i32 = arith.constant 0 : i32
    %c0_i32_0 = arith.constant 0 : i32
    %c0_i32_1 = arith.constant 0 : i32
    return %c0_i32, %c0_i32_0 : i32, i32
  }
  func.func @transform_3(%arg0: i32) -> (i32, i32) {
    %c0_i32 = arith.constant 0 : i32
    %c0_i32_0 = arith.constant 0 : i32
    %c0_i32_1 = arith.constant 0 : i32
    return %c0_i32, %c0_i32_0 : i32, i32
  }
  func.func @transform_4(%arg0: i32) -> (i32, i32) {
    %c0_i32 = arith.constant 0 : i32
    %c0_i32_0 = arith.constant 0 : i32
    %c0_i32_1 = arith.constant 0 : i32
    return %c0_i32, %c0_i32_0 : i32, i32
  }
  func.func @transform_5(%arg0: i32) -> (i32, i32) {
    %c0_i32 = arith.constant 0 : i32
    %c0_i32_0 = arith.constant 0 : i32
    return %arg0, %c0_i32 : i32, i32
  }
}

</mosaic_0001>

<llo_original>
// kernel: tpu_custom_call.1
$region0: #{tpu_custom_call.1}
  #allocation0 [shape = 'u32[]', space=smem, size = 0x4, offset = 0x4, fixed_abs, tag = 'smem constant byte address 0x4 - core index']
  #allocation1 [shape = 'u32[144,128]{1,0:T(1,128)}', space=vmem, size = 0x12000, scoped, tag = 'internal scratch']
  %s0 = inlined_call_operand.vmem [shape: f32[2,128], index: 0, kind: input, shape index: {}]
  %s1 = inlined_call_operand.vmem [shape: f32[128,56], index: 1, kind: input, shape index: {}]
  %s2 = inlined_call_operand.vmem [shape: f32[1,56], index: 2, kind: input, shape index: {}]
  %s3 = inlined_call_operand.vmem [shape: f32[56,48], index: 3, kind: input, shape index: {}]
  %s4 = inlined_call_operand.vmem [shape: f32[1,48], index: 4, kind: input, shape index: {}]
  %s5 = inlined_call_operand.hbm [shape: f32[2,48], index: 5, kind: output, shape index: {}]
  %s6 = sld [smem:[#allocation0]]
  $region30: #{tpu_custom_call.1} parent=0
    _
  %s8 = ssub.s32 1, %s6
  %s9 = scalar_select 0, %s8, %s6
  $region1: #{tpu_custom_call.1} parent=0
    #allocation2 [shape = 'u8[1024]{0}', space=vmem, size = 0x400, scoped, tag = 'output window, operand 0, single buffered']
    #allocation3 [shape = 's32[1]{0}', space=sflag, size = 0x4, scoped, tag = 'scoped memory for tpu_custom_call.1']
    %10 = vsyncpa [#allocation3], 0
    // Predicated region
    $region2: #{tpu_custom_call.1} parent=1 // pred_check
      _
    $region3: #{tpu_custom_call.1} parent=1 // pred_check_branch
      %12 = sbr.rel (0) target = $region5
    $region4: #{tpu_custom_call.1} parent=1 // pred_region
      _
    $region5: #{tpu_custom_call.1} parent=1 // pred_fallthru
      _
    // Predicated region
    $region6: #{tpu_custom_call.1} parent=1 // pred_check
      _
    $region7: #{tpu_custom_call.1} parent=1 // pred_check_branch
      %14 = sbr.rel (0) target = $region9
    $region8: #{tpu_custom_call.1} parent=1 // pred_region
      _
    $region9: #{tpu_custom_call.1} parent=1 // pred_fallthru
      _
    // Predicated region
    $region10: #{tpu_custom_call.1} parent=1 // pred_check
      _
    $region11: #{tpu_custom_call.1} parent=1 // pred_check_branch
      %16 = sbr.rel (0) target = $region13
    $region12: #{tpu_custom_call.1} parent=1 // pred_region
      _
    $region13: #{tpu_custom_call.1} parent=1 // pred_fallthru
      _
    // Predicated region
    $region14: #{tpu_custom_call.1} parent=1 // pred_check
      _
    $region15: #{tpu_custom_call.1} parent=1 // pred_check_branch
      %18 = sbr.rel (0) target = $region17
    $region16: #{tpu_custom_call.1} parent=1 // pred_region
      _
    $region17: #{tpu_custom_call.1} parent=1 // pred_fallthru
      _
    // Predicated region
    $region18: #{tpu_custom_call.1} parent=1 // pred_check
      _
    $region19: #{tpu_custom_call.1} parent=1 // pred_check_branch
      %20 = sbr.rel (0) target = $region21
    $region20: #{tpu_custom_call.1} parent=1 // pred_region
      _
    $region21: #{tpu_custom_call.1} parent=1 // pred_fallthru
      _
    %v21 = vld [vmem:[%s0] sm:$0x3]
    %v22 = vld [vmem:[%s1] sm:$0xff]
    %v23 = vld [vmem:[%s1 + $0x8] sm:$0xff]
    %v24 = vld [vmem:[%s1 + $0x10] sm:$0xff]
    %v25 = vld [vmem:[%s1 + $0x18] sm:$0xff]
    %v26 = vld [vmem:[%s1 + $0x20] sm:$0xff]
    %v27 = vld [vmem:[%s1 + $0x28] sm:$0xff]
    %v28 = vld [vmem:[%s1 + $0x30] sm:$0xff]
    %v29 = vld [vmem:[%s1 + $0x38] sm:$0xff]
    %v30 = vld [vmem:[%s1 + $0x40] sm:$0xff]
    %v31 = vld [vmem:[%s1 + $0x48] sm:$0xff]
    %v32 = vld [vmem:[%s1 + $0x50] sm:$0xff]
    %v33 = vld [vmem:[%s1 + $0x58] sm:$0xff]
    %v34 = vld [vmem:[%s1 + $0x60] sm:$0xff]
    %v35 = vld [vmem:[%s1 + $0x68] sm:$0xff]
    %v36 = vld [vmem:[%s1 + $0x70] sm:$0xff]
    %v37 = vld [vmem:[%s1 + $0x78] sm:$0xff]
    %v38 = vld [vmem:[%s2] sm:$0x1]
    %v40 = vlaneseq
    %v41 = vshrl.u32 %v40, 7
    %v42 = vsub.s32 0, %v41
    %v43 = vrot.slane %v38, %v42
    %45 = vmatprep.subr.mxu0 0.0
    %46 = vmatpush1.msra.mxu0 %v22
    %47 = vmatprep.subr.mxu0 0.0
    %48 = vmatpush1.msra.mxu0 %v23
    %49 = vmatprep.subr.mxu0 0.0
    %50 = vmatpush1.msra.mxu0 %v24
    %51 = vmatprep.subr.mxu0 0.0
    %52 = vmatpush1.msra.mxu0 %v25
    %53 = vmatprep.subr.mxu0 0.0
    %54 = vmatpush1.msra.mxu0 %v26
    %55 = vmatprep.subr.mxu0 0.0
    %56 = vmatpush1.msra.mxu0 %v27
    %57 = vmatprep.subr.mxu0 0.0
    %58 = vmatpush1.msra.mxu0 %v28
    %59 = vmatprep.subr.mxu0 0.0
    %60 = vmatpush1.msra.mxu0 %v29
    %61 = vmatprep.subr.mxu0 0.0
    %62 = vmatpush1.msra.mxu0 %v30
    %63 = vmatprep.subr.mxu0 0.0
    %64 = vmatpush1.msra.mxu0 %v31
    %65 = vmatprep.subr.mxu0 0.0
    %66 = vmatpush1.msra.mxu0 %v32
    %67 = vmatprep.subr.mxu0 0.0
    %68 = vmatpush1.msra.mxu0 %v33
    %69 = vmatprep.subr.mxu0 0.0
    %70 = vmatpush1.msra.mxu0 %v34
    %71 = vmatprep.subr.mxu0 0.0
    %72 = vmatpush1.msra.mxu0 %v35
    %73 = vmatprep.subr.mxu0 0.0
    %74 = vmatpush1.msra.mxu0 %v36
    %75 = vmatprep.subr.mxu0 0.0
    %76 = vmatpush1.msra.mxu0 %v37
    %77 = vmatprep.subr.mxu0 0.0
    %78 = vmatpush1.msra.mxu0 0.0
    %79 = vmatprep.subr.mxu0 0.0
    %80 = vmatpush1.msra.mxu0 0.0
    %81 = vmatprep.subr.mxu0 0.0
    %82 = vmatpush1.msra.mxu0 0.0
    %83 = vmatprep.subr.mxu0 0.0
    %84 = vmatpush1.msra.mxu0 0.0
    %85 = vmatprep.subr.mxu0 0.0
    %86 = vmatpush1.msra.mxu0 0.0
    %87 = vmatprep.subr.mxu0 0.0
    %88 = vmatpush1.msra.mxu0 0.0
    %89 = vmatprep.subr.mxu0 0.0
    %90 = vmatpush1.msra.mxu0 0.0
    %91 = vmatprep.subr.mxu0 0.0
    %92 = vmatpush1.msra.mxu0 0.0
    %93 = vmatprep.subr.mxu0 0.0
    %94 = vmatpush1.msra.mxu0 0.0
    %95 = vmatprep.subr.mxu0 0.0
    %96 = vmatpush1.msra.mxu0 0.0
    %97 = vmatprep.subr.mxu0 0.0
    %98 = vmatpush1.msra.mxu0 0.0
    %99 = vmatprep.subr.mxu0 0.0
    %100 = vmatpush1.msra.mxu0 0.0
    %101 = vmatprep.subr.mxu0 0.0
    %102 = vmatpush1.msra.mxu0 0.0
    %103 = vmatprep.subr.mxu0 0.0
    %104 = vmatpush1.msra.mxu0 0.0
    %105 = vmatprep.subr.mxu0 0.0
    %106 = vmatpush1.msra.mxu0 0.0
    %107 = vmatprep.subr.mxu0 0.0
    %108 = vmatpush1.msra.mxu0 0.0
    %109 = vmatprep.mubr.f32.mxu0 0.0
    %110 = vmatmul.mubr.f32.gmra.mrb[0].mxu0 %v21
    %v111 = vpop.f32.mrb[0].mxu0
    %v112 = vadd.f32 %v43, %v111
    %v113 = vpop.f32.mrb[0].mxu0
    %114 = vdwg.mxu0
    %v115 = vmax.f32 %v112, 0.0
    %v116 = vld [vmem:[%s3] sm:$0xff]
    %v117 = vld [vmem:[%s3 + $0x8] sm:$0xff]
    %v118 = vld [vmem:[%s3 + $0x10] sm:$0xff]
    %v119 = vld [vmem:[%s3 + $0x18] sm:$0xff]
    %v120 = vld [vmem:[%s3 + $0x20] sm:$0xff]
    %v121 = vld [vmem:[%s3 + $0x28] sm:$0xff]
    %v122 = vld [vmem:[%s3 + $0x30] sm:$0xff]
    %v123 = vld [vmem:[%s4] sm:$0x1]
    %v125 = vlaneseq
    %v126 = vshrl.u32 %v125, 7
    %v127 = vsub.s32 0, %v126
    %v128 = vrot.slane %v123, %v127
    %vm130 = vcmask 457728
    %v132 = vsel %vm130, %v115, 0
    %134 = vmatprep.subr.mxu0 0.0
    %135 = vmatpush1.msra.mxu0 %v116
    %136 = vmatprep.subr.mxu0 0.0
    %137 = vmatpush1.msra.mxu0 %v117
    %138 = vmatprep.subr.mxu0 0.0
    %139 = vmatpush1.msra.mxu0 %v118
    %140 = vmatprep.subr.mxu0 0.0
    %141 = vmatpush1.msra.mxu0 %v119
    %142 = vmatprep.subr.mxu0 0.0
    %143 = vmatpush1.msra.mxu0 %v120
    %144 = vmatprep.subr.mxu0 0.0
    %145 = vmatpush1.msra.mxu0 %v121
    %146 = vmatprep.subr.mxu0 0.0
    %147 = vmatpush1.msra.mxu0 %v122
    %148 = vmatprep.subr.mxu0 0.0
    %149 = vmatpush1.msra.mxu0 0.0
    %150 = vmatprep.subr.mxu0 0.0
    %151 = vmatpush1.msra.mxu0 0.0
    %152 = vmatprep.subr.mxu0 0.0
    %153 = vmatpush1.msra.mxu0 0.0
    %154 = vmatprep.subr.mxu0 0.0
    %155 = vmatpush1.msra.mxu0 0.0
    %156 = vmatprep.subr.mxu0 0.0
    %157 = vmatpush1.msra.mxu0 0.0
    %158 = vmatprep.subr.mxu0 0.0
    %159 = vmatpush1.msra.mxu0 0.0
    %160 = vmatprep.subr.mxu0 0.0
    %161 = vmatpush1.msra.mxu0 0.0
    %162 = vmatprep.subr.mxu0 0.0
    %163 = vmatpush1.msra.mxu0 0.0
    %164 = vmatprep.subr.mxu0 0.0
    %165 = vmatpush1.msra.mxu0 0.0
    %166 = vmatprep.subr.mxu0 0.0
    %167 = vmatpush1.msra.mxu0 0.0
    %168 = vmatprep.subr.mxu0 0.0
    %169 = vmatpush1.msra.mxu0 0.0
    %170 = vmatprep.subr.mxu0 0.0
    %171 = vmatpush1.msra.mxu0 0.0
    %172 = vmatprep.subr.mxu0 0.0
    %173 = vmatpush1.msra.mxu0 0.0
    %174 = vmatprep.subr.mxu0 0.0
    %175 = vmatpush1.msra.mxu0 0.0
    %176 = vmatprep.subr.mxu0 0.0
    %177 = vmatpush1.msra.mxu0 0.0
    %178 = vmatprep.subr.mxu0 0.0
    %179 = vmatpush1.msra.mxu0 0.0
    %180 = vmatprep.subr.mxu0 0.0
    %181 = vmatpush1.msra.mxu0 0.0
    %182 = vmatprep.subr.mxu0 0.0
    %183 = vmatpush1.msra.mxu0 0.0
    %184 = vmatprep.subr.mxu0 0.0
    %185 = vmatpush1.msra.mxu0 0.0
    %186 = vmatprep.subr.mxu0 0.0
    %187 = vmatpush1.msra.mxu0 0.0
    %188 = vmatprep.subr.mxu0 0.0
    %189 = vmatpush1.msra.mxu0 0.0
    %190 = vmatprep.subr.mxu0 0.0
    %191 = vmatpush1.msra.mxu0 0.0
    %192 = vmatprep.subr.mxu0 0.0
    %193 = vmatpush1.msra.mxu0 0.0
    %194 = vmatprep.subr.mxu0 0.0
    %195 = vmatpush1.msra.mxu0 0.0
    %196 = vmatprep.subr.mxu0 0.0
    %197 = vmatpush1.msra.mxu0 0.0
    %198 = vmatprep.mubr.f32.mxu0 0.0
    %199 = vmatmul.mubr.f32.gmra.mrb[0].mxu0 %v132
    %v200 = vpop.f32.mrb[0].mxu0
    %v201 = vadd.f32 %v128, %v200
    %v202 = vpop.f32.mrb[0].mxu0
    %203 = vdwg.mxu0
    %v204 = vmax.f32 %v201, 0.0
    %vm205 = vcmask 386048
    %206 = vst.msk [vmem:[#allocation2] sm:$0x3] %vm205, %v204
    // Predicated region
    $region22: #{tpu_custom_call.1} parent=1 // pred_check
      _
    $region23: #{tpu_custom_call.1} parent=1 // pred_check_branch
      %208 = sbr.rel (0) target = $region25
    $region24: #{tpu_custom_call.1} parent=1 // pred_region
      %s210 = ssub.s32 32, 32
      %211 = vsyncadd [#allocation3], %s210
      %s213 = sshll.u32 [#allocation2], 4
      %s214 = int_to_ptr.vmem [resolvable:$true] %s213
      %216 = dma.vmem_to_hbm [thread:$0]  %s214, 32, %s5, [#allocation3]
    $region25: #{tpu_custom_call.1} parent=1 // pred_fallthru
      _
    // Predicated region
    $region26: #{tpu_custom_call.1} parent=1 // pred_check
      _
    $region27: #{tpu_custom_call.1} parent=1 // pred_check_branch
      %218 = sbr.rel (0) target = $region29
    $region28: #{tpu_custom_call.1} parent=1 // pred_region
      %219 = dma.done [#allocation3], 32
    $region29: #{tpu_custom_call.1} parent=1 // pred_fallthru
      _
    %220 = vsyncpa [#allocation3], 1

</llo_original>
